<compile_context>
chip_gen: v5e
topology: v5e:2x2
jax: 0.10.0
libtpu: 0.0.40
codegen_flags: <defaults>
</compile_context>

<pallas_src>
import numpy as np
import jax
import jax.numpy as jnp
from jax.experimental import pallas as pl
from jax.experimental.pallas import tpu as pltpu


def _get_sinusoid_encoding_table(num_pos: int, dim_hid: int) -> jnp.ndarray:
    """Deterministic sinusoid table, identical to the PyTorch buffer. Shape (num_pos, dim_hid), float32."""
    pos = np.arange(num_pos, dtype=np.float64)[:, None]            # (P, 1)
    hid = np.arange(dim_hid, dtype=np.float64)[None, :]            # (1, D)
    angle = pos / np.power(10000.0, 2.0 * (hid // 2) / dim_hid)    # (P, D)
    table = np.array(angle)
    table[:, 0::2] = np.sin(table[:, 0::2])
    table[:, 1::2] = np.cos(table[:, 1::2])
    return jnp.asarray(table, dtype=jnp.float32)


def prepare_pos_table(pos_table: jnp.ndarray, seq_len: int, dtype=None) -> jnp.ndarray:
    """Hoisted glue: slice/flatten the table once per seq_len.

    pos_table: (P, D) with P >= seq_len. Returns (1, seq_len * D). By default the table
    keeps its own dtype (float32), matching PyTorch's fp32 registered buffer; pass
    `dtype` explicitly only if the buffer would have been cast with the module.
    """
    P, D = pos_table.shape
    if P < seq_len:
        raise ValueError(f"pos_table has only {P} positions but seq_len={seq_len}")
    flat = pos_table[:seq_len].reshape(1, seq_len * D)
    return flat if dtype is None else flat.astype(dtype)


def _add_pos_kernel(x_ref, pos_ref, o_ref):
    # (bb, tf) + (1, tf) elementwise add with sublane broadcast of the pos row.
    o_ref[...] = (x_ref[...] + pos_ref[...]).astype(o_ref.dtype)


# ----------------------------- tiling heuristics ---------------------------------


def _device_kind() -> str:
    try:
        return jax.devices()[0].device_kind.lower()
    except Exception:
        return ""


def _per_step_byte_target() -> int:
    """Bytes of x per grid step: big enough to amortize ~0.35 us/step overhead against
    the chip's HBM bandwidth, small enough to stay comfortably inside scoped VMEM."""
    kind = _device_kind()
    if "v7" in kind:
        return 4 << 20   # ~3.2 TB/s HBM: 4 MiB keeps per-step overhead < ~10%
    if "v5 lite" in kind or "v5e" in kind or "v5litepod" in kind:
        return 1 << 20   # 16 MiB scoped-VMEM default, ~0.8 TB/s HBM
    return 2 << 20       # v6e / default: 85%+ of HBM roofline at 2-4 MiB tiles


def _sublane_pack(dtype) -> int:
    """Rows per packed vreg sublane group: 8 for f32, 16 for bf16, 32 for int8."""
    itemsize = jnp.dtype(dtype).itemsize
    return max(8, 32 // max(1, itemsize))


def _pick_lane_tile(F: int, cap_elems: int) -> int:
    """Largest tile of the flattened lane axis that divides F, is a multiple of 128,
    and is <= cap_elems; falls back to the full extent (always legal)."""
    cap_elems = max(128, cap_elems)
    if F <= cap_elems:
        return F
    if F % 128 == 0:
        for k in range(cap_elems // 128, 0, -1):
            tf = k * 128
            if F % tf == 0:
                return tf
    return F


def _pick_batch_tile(B: int, rows_cap: int, pack: int) -> int:
    """Batch rows per block: full B if it fits the budget, else the largest
    sublane-pack-aligned divisor of B under the cap (plain divisor as fallback)."""
    rows_cap = max(1, rows_cap)
    if B <= rows_cap:
        return B
    fallback = 1
    for bb in range(min(B, rows_cap), 0, -1):
        if B % bb == 0:
            if bb % pack == 0:
                return bb
            if fallback == 1:
                fallback = bb
    return fallback


# Problems smaller than this (bytes of x) are cheaper as a single fused XLA add.
_XLA_FAST_PATH_BYTES = 64 << 10


def positional_encoding(x: jnp.ndarray, pos_flat: jnp.ndarray, *, force_pallas: bool = False) -> jnp.ndarray:
    """x: (B, S, D); pos_flat: (1, S*D) from prepare_pos_table(). Returns x + pos."""
    B, S, D = x.shape
    F = S * D
    if pos_flat.shape != (1, F):
        raise ValueError(f"pos_flat must have shape (1, {F}), got {pos_flat.shape}")

    out_dtype = jnp.result_type(x.dtype, pos_flat.dtype)
    x_item = jnp.dtype(x.dtype).itemsize

    # Tiny-problem fast path: kernel launch + grid steps are pure overhead.
    if not force_pallas and B * F * x_item < _XLA_FAST_PATH_BYTES:
        return (x + pos_flat.reshape(1, S, D)).astype(out_dtype)

    x2 = x.reshape(B, F)  # lane-dense layout: trailing dim is S*D (multiple of 128 here)

    target_bytes = _per_step_byte_target()
    pack = _sublane_pack(x.dtype)

    # Lane-axis tile (multiple of 128 or the full extent).
    tf = _pick_lane_tile(F, target_bytes // x_item)
    # Batch rows per block: sublane-pack aligned (or full B), capped by the byte budget.
    bb = _pick_batch_tile(B, target_bytes // max(1, tf * x_item), pack)

    # Batch innermost -> pos block index (0, f) is constant across consecutive steps,
    # so Pallas fetches pos once per lane tile instead of re-DMA'ing it every step.
    grid = (F // tf, B // bb)

    # Explicit scoped-VMEM budget: double-buffered x + out blocks + resident pos row,
    # with headroom; clamped well below every generation's physical VMEM (>= 64 MiB).
    out_item = jnp.dtype(out_dtype).itemsize
    pos_item = jnp.dtype(pos_flat.dtype).itemsize
    live_bytes = 2 * bb * tf * (x_item + out_item) + 2 * tf * pos_item
    vmem_limit = int(min(48 << 20, max(32 << 20, live_bytes + (4 << 20))))

    out2 = pl.pallas_call(
        _add_pos_kernel,
        out_shape=jax.ShapeDtypeStruct((B, F), out_dtype),
        grid_spec=pltpu.PrefetchScalarGridSpec(
            num_scalar_prefetch=0,
            grid=grid,
            in_specs=[
                pl.BlockSpec((bb, tf), lambda f, b: (b, f)),   # x tile
                pl.BlockSpec((1, tf), lambda f, b: (0, f)),    # pos tile: independent of b
                                                               # -> stays resident across the
                                                               # inner batch loop (no re-DMA)
            ],
            out_specs=pl.BlockSpec((bb, tf), lambda f, b: (b, f)),
        ),
        compiler_params=pltpu.CompilerParams(
            dimension_semantics=("parallel", "parallel"),  # pure elementwise: both axes shardable
            vmem_limit_bytes=vmem_limit,
        ),
    )(x2, pos_flat)

    return out2.reshape(B, S, D)


if __name__ == "__main__":
    # Module config: dim_hid=32, num_pos=16; input x: (batch=2, seq=8, dim_hid=32)
    dim_hid, num_pos = 32, 16
    B, S = 2, 8

    pos_table = _get_sinusoid_encoding_table(num_pos, dim_hid)

    key = jax.random.PRNGKey(0)
    x = jax.random.normal(key, (B, S, dim_hid), dtype=jnp.float32)

    # Hoisted once per seq_len; reuse across calls.
    pos_flat = prepare_pos_table(pos_table, S)

    # Tiny shape: force the Pallas path so the kernel itself is exercised/verified.
    out = positional_encoding(x, pos_flat, force_pallas=True)
    out = jax.block_until_ready(out)
    ref = x + pos_table[:S][None, :, :]
    np.testing.assert_allclose(np.asarray(out), np.asarray(ref), rtol=1e-6, atol=1e-6)

    # Larger shape: exercises the tiled multi-step path (batch innermost, resident pos).
    B2, S2, D2 = 32, 128, 256
    pos_table2 = _get_sinusoid_encoding_table(S2, D2)
    x_big = jax.random.normal(jax.random.PRNGKey(0), (B2, S2, D2), dtype=jnp.float32)
    pos_flat2 = prepare_pos_table(pos_table2, S2)
    out_big = jax.block_until_ready(positional_encoding(x_big, pos_flat2))
    ref_big = x_big + pos_table2[None, :, :]
    np.testing.assert_allclose(np.asarray(out_big), np.asarray(ref_big), rtol=1e-6, atol=1e-6)

    print("KERNEL_OK")
</pallas_src>

<mosaic_0001>
module attributes {stable_mosaic.version = 11 : i64} {
  func.func @_add_pos_kernel(%arg0: i32, %arg1: i32, %arg2: memref<2x256xf32, #tpu.memory_space<vmem>>, %arg3: memref<1x256xf32, #tpu.memory_space<vmem>>, %arg4: memref<2x256xf32, #tpu.memory_space<vmem>>) attributes {dimension_semantics = [#tpu.dimension_semantics<parallel>, #tpu.dimension_semantics<parallel>], iteration_bounds = array<i64: 1, 1>, scalar_prefetch = 0 : i64, scratch_operands = 0 : i64, tpu.core_type = #tpu.core_type<tc>, window_params = [{transform_indices = @transform_0, window_bounds = array<i64: 2, 256>}, {transform_indices = @transform_1, window_bounds = array<i64: 1, 256>}, {transform_indices = @transform_2, window_bounds = array<i64: 2, 256>}]} {
    %c0 = arith.constant 0 : index
    %c0_0 = arith.constant 0 : index
    %0 = vector.load %arg2[%c0, %c0_0] : memref<2x256xf32, #tpu.memory_space<vmem>>, vector<2x256xf32>
    %c0_1 = arith.constant 0 : index
    %c0_2 = arith.constant 0 : index
    %1 = vector.load %arg3[%c0_1, %c0_2] : memref<1x256xf32, #tpu.memory_space<vmem>>, vector<1x256xf32>
    %2 = vector.broadcast %1 : vector<1x256xf32> to vector<2x256xf32>
    %3 = arith.addf %0, %2 : vector<2x256xf32>
    %c0_3 = arith.constant 0 : index
    %c0_4 = arith.constant 0 : index
    %4 = vector.load %arg4[%c0_3, %c0_4] : memref<2x256xf32, #tpu.memory_space<vmem>>, vector<2x256xf32>
    tpu.vector_store %arg4[%c0_3, %c0_4], %3 {strides = array<i32>} : memref<2x256xf32, #tpu.memory_space<vmem>>, vector<2x256xf32>,
    return
  }
  func.func @transform_0(%arg0: i32, %arg1: i32) -> (i32, i32) {
    %c0_i32 = arith.constant 0 : i32
    return %arg1, %arg0 : i32, i32
  }
  func.func @transform_1(%arg0: i32, %arg1: i32) -> (i32, i32) {
    %c0_i32 = arith.constant 0 : i32
    %c0_i32_0 = arith.constant 0 : i32
    return %c0_i32, %arg0 : i32, i32
  }
  func.func @transform_2(%arg0: i32, %arg1: i32) -> (i32, i32) {
    %c0_i32 = arith.constant 0 : i32
    return %arg1, %arg0 : i32, i32
  }
}

</mosaic_0001>

<llo_original>
// kernel: tpu_custom_call.1
$region0: #{tpu_custom_call.1}
  #allocation0 [shape = 'u32[]', space=smem, size = 0x4, offset = 0x4, fixed_abs, tag = 'smem constant byte address 0x4 - core index']
  #allocation1 [shape = 'u32[72,128]{1,0:T(1,128)}', space=vmem, size = 0x9000, scoped, tag = 'internal scratch']
  %s0 = inlined_call_operand.hbm [shape: f32[2,256], index: 0, kind: input, shape index: {}]
  %s1 = inlined_call_operand.hbm [shape: f32[1,256], index: 1, kind: input, shape index: {}]
  %s2 = inlined_call_operand.hbm [shape: f32[2,256], index: 2, kind: output, shape index: {}]
  %s3 = sld [smem:[#allocation0]]
  $region26: #{tpu_custom_call.1} parent=0
    _
  %s5 = ssub.s32 1, %s3
  %s6 = scalar_select 0, %s5, %s3
  $region1: #{tpu_custom_call.1} parent=0
    #allocation2 [shape = 'u8[2048]{0}', space=vmem, size = 0x800, scoped, tag = 'input window, operand 0, single buffered']
    #allocation3 [shape = 's32[1]{0}', space=sflag, size = 0x4, scoped, tag = 'scoped memory for tpu_custom_call.1']
    #allocation4 [shape = 's32[1]{0}', space=sflag, size = 0x4, scoped, tag = 'scoped memory for tpu_custom_call.1']
    #allocation5 [shape = 'u8[1024]{0}', space=vmem, size = 0x400, scoped, tag = 'input window, operand 1, single buffered']
    #allocation6 [shape = 's32[1]{0}', space=sflag, size = 0x4, scoped, tag = 'scoped memory for tpu_custom_call.1']
    #allocation7 [shape = 'u8[2048]{0}', space=vmem, size = 0x800, scoped, tag = 'output window, operand 0, single buffered']
    %7 = vsyncpa [#allocation3], 0
    %8 = vsyncpa [#allocation6], 0
    %9 = vsyncpa [#allocation4], 0
    // Predicated region
    $region2: #{tpu_custom_call.1} parent=1 // pred_check
      _
    $region3: #{tpu_custom_call.1} parent=1 // pred_check_branch
      %11 = sbr.rel (0) target = $region5
    $region4: #{tpu_custom_call.1} parent=1 // pred_region
      %13 = vsyncadd [#allocation3], 0
      %s15 = sshll.u32 %s0, 4
      %s16 = int_to_ptr.hbm [resolvable:$true] %s15
      %s17 = sshll.u32 [#allocation2], 4
      %s18 = int_to_ptr.vmem [resolvable:$true] %s17
      %20 = dma.hbm_to_vmem [thread:$0]  %s16, 64, %s18, [#allocation3]
    $region5: #{tpu_custom_call.1} parent=1 // pred_fallthru
      _
    // Predicated region
    $region6: #{tpu_custom_call.1} parent=1 // pred_check
      _
    $region7: #{tpu_custom_call.1} parent=1 // pred_check_branch
      %22 = sbr.rel (0) target = $region9
    $region8: #{tpu_custom_call.1} parent=1 // pred_region
      %24 = vsyncadd [#allocation6], 0
      %s26 = sshll.u32 %s1, 4
      %s27 = int_to_ptr.hbm [resolvable:$true] %s26
      %s28 = sshll.u32 [#allocation5], 4
      %s29 = int_to_ptr.vmem [resolvable:$true] %s28
      %31 = dma.hbm_to_vmem [thread:$0]  %s27, 32, %s29, [#allocation6]
    $region9: #{tpu_custom_call.1} parent=1 // pred_fallthru
      _
    // Predicated region
    $region10: #{tpu_custom_call.1} parent=1 // pred_check
      _
    $region11: #{tpu_custom_call.1} parent=1 // pred_check_branch
      %33 = sbr.rel (0) target = $region13
    $region12: #{tpu_custom_call.1} parent=1 // pred_region
      %35 = dma.done [#allocation3], 64
    $region13: #{tpu_custom_call.1} parent=1 // pred_fallthru
      _
    // Predicated region
    $region14: #{tpu_custom_call.1} parent=1 // pred_check
      _
    $region15: #{tpu_custom_call.1} parent=1 // pred_check_branch
      %37 = sbr.rel (0) target = $region17
    $region16: #{tpu_custom_call.1} parent=1 // pred_region
      %39 = dma.done [#allocation6], 32
    $region17: #{tpu_custom_call.1} parent=1 // pred_fallthru
      _
    %v40 = vld [vmem:[#allocation2] sm:$0xf]
    %v41 = vld [vmem:[#allocation5] sm:$0x3]
    %v43 = vperm.slane %v41, 0
    %v44 = vperm.slane %v41, 1
    %v45 = vrot.slane %v44, 6
    %vm46 = vcmask 1041408
    %v47 = vsel %vm46, %v43, %v45
    %v49 = vadd.f32 %v40, %v47
    %50 = vst [vmem:[#allocation7] sm:$0xf] %v49
    // Predicated region
    $region18: #{tpu_custom_call.1} parent=1 // pred_check
      _
    $region19: #{tpu_custom_call.1} parent=1 // pred_check_branch
      %52 = sbr.rel (0) target = $region21
    $region20: #{tpu_custom_call.1} parent=1 // pred_region
      %54 = vsyncadd [#allocation4], 0
      %s56 = sshll.u32 [#allocation7], 4
      %s57 = int_to_ptr.vmem [resolvable:$true] %s56
      %s58 = sshll.u32 %s2, 4
      %s59 = int_to_ptr.hbm [resolvable:$true] %s58
      %61 = dma.vmem_to_hbm [thread:$0]  %s57, 64, %s59, [#allocation4]
    $region21: #{tpu_custom_call.1} parent=1 // pred_fallthru
      _
    // Predicated region
    $region22: #{tpu_custom_call.1} parent=1 // pred_check
      _
    $region23: #{tpu_custom_call.1} parent=1 // pred_check_branch
      %63 = sbr.rel (0) target = $region25
    $region24: #{tpu_custom_call.1} parent=1 // pred_region
      %65 = dma.done [#allocation4], 64
    $region25: #{tpu_custom_call.1} parent=1 // pred_fallthru
      _
    %66 = vsyncpa [#allocation3], 1
    %67 = vsyncpa [#allocation6], 1
    %68 = vsyncpa [#allocation4], 1

</llo_original>
